<compile_context>
chip_gen: v7x
topology: tpu7x:2x2x1
jax: 0.10.0
libtpu: 0.0.40
codegen_flags: <defaults>
</compile_context>

<pallas_src>
import functools

import jax
import jax.numpy as jnp
from jax.experimental import pallas as pl
from jax.experimental.pallas import tpu as pltpu


# --------------------------------------------------------------------------
# Kernels
# --------------------------------------------------------------------------

def _fused_kernel(x_ref, gamma_ref, beta_ref, o_ref, *, eps, negative_slope,
                  count):
    """Whole tensor resident in VMEM: stats + normalize + LeakyReLU in one go."""
    x = x_ref[...].astype(jnp.float32)                         # (N, C, HW)
    inv = 1.0 / float(count)
    mean = jnp.sum(x, axis=(0, 2), keepdims=True) * inv        # (1, C, 1)
    # Biased variance (PyTorch training-mode normalization).  E[x^2]-mean^2 in
    # f32; clamp tiny negatives from cancellation.
    var = jnp.maximum(jnp.sum(x * x, axis=(0, 2), keepdims=True) * inv
                      - mean * mean, 0.0)
    scale = gamma_ref[...] * jax.lax.rsqrt(var + eps)           # (1, C, 1)
    shift = beta_ref[...] - mean * scale
    y = x * scale + shift
    o_ref[...] = jnp.where(y >= 0.0, y, negative_slope * y).astype(o_ref.dtype)


def _stats_kernel(x_ref, sum_ref, sq_ref, *, hw, t_hw, needs_mask):
    """Pass 1: per-(batch-tile, channel) sum / sum-of-squares.

    x_ref tile: (b_t, C, t_hw) — channels on sublanes, spatial on lanes.
    Accumulates into (1, C, 1) output blocks (resident across the spatial
    grid axis, which is marked "arbitrary").
    """
    si = pl.program_id(1)

    @pl.when(si == 0)
    def _init():
        sum_ref[...] = jnp.zeros_like(sum_ref)
        sq_ref[...] = jnp.zeros_like(sq_ref)

    x = x_ref[...].astype(jnp.float32)                          # (b_t, C, t_hw)
    if needs_mask:
        # Final spatial tile is partial (cdiv grid): zero out padded lanes so
        # they do not corrupt the statistics.
        lane = jax.lax.broadcasted_iota(jnp.int32, x.shape, dimension=2)
        x = jnp.where(lane < (hw - si * t_hw), x, 0.0)

    sum_ref[...] += jnp.sum(x, axis=(0, 2), keepdims=True)      # (1, C, 1)
    sq_ref[...] += jnp.sum(x * x, axis=(0, 2), keepdims=True)   # (1, C, 1)


def _normalize_kernel(x_ref, scale_ref, shift_ref, o_ref, *, negative_slope):
    """Pass 2: y = x*scale + shift, then LeakyReLU, on (b_t, C, t_hw) tiles.

    Padded lanes of the last partial tile compute garbage but their stores are
    dropped by Pallas (out-of-bounds block writes are discarded).
    """
    x = x_ref[...].astype(jnp.float32)                          # (b_t, C, t_hw)
    y = x * scale_ref[...] + shift_ref[...]                     # (C,1) broadcasts
    o_ref[...] = jnp.where(y >= 0.0, y, negative_slope * y).astype(o_ref.dtype)


# --------------------------------------------------------------------------
# Tiling / budget helpers
# --------------------------------------------------------------------------

def _hw_budgets():
    """Generation-aware VMEM scoped limit and per-tile byte budget."""
    try:
        cap = int(pltpu.get_tpu_info().vmem_capacity_bytes)
    except Exception:
        cap = 64 * 1024 * 1024  # conservative (v7x-sized) fallback
    if cap >= 96 * 1024 * 1024:           # v5e / v6e: 128 MiB physical VMEM
        return 64 * 1024 * 1024, 4 * 1024 * 1024
    else:                                  # v7x: 64 MiB physical per TC
        return 40 * 1024 * 1024, 2 * 1024 * 1024


def _largest_divisor_leq(n, cap):
    cap = max(1, min(int(cap), n))
    for d in range(cap, 0, -1):
        if n % d == 0:
            return d
    return 1


def _choose_tiles(n, c, hw, itemsize, tile_budget):
    """Returns (b_t, t_hw, needs_mask).

    Either full-spatial blocks with batch folding (small C*HW / hw < 128), or
    lane-dense 128-multiple spatial tiles with a cdiv grid + masked last tile.
    """
    per_sample = max(c * hw * itemsize, 1)
    if per_sample <= tile_budget or hw < 128:
        # Full spatial extent per block (always layout-legal); fold batch
        # elements to fill the budget.  Keep at least 2 batch tiles when
        # possible so pass 1 can shard across v7x's two TensorCores.
        b_cap = max(1, tile_budget // per_sample)
        b_cap = min(b_cap, max(1, n // 2)) if n >= 2 else 1
        b_t = _largest_divisor_leq(n, b_cap)
        return b_t, hw, False
    # Spatial tiling: multiples of 128 lanes, sized to the budget.
    max_lanes = max(128, (tile_budget // (c * itemsize)) // 128 * 128)
    t_hw = min(max_lanes, (hw // 128) * 128)
    needs_mask = (hw % t_hw) != 0
    return 1, t_hw, needs_mask


# --------------------------------------------------------------------------
# Wrapper
# --------------------------------------------------------------------------

def regular_batch_norm_2d(x_nchw, gamma, beta, *, eps=1e-5, negative_slope=0.01,
                          donate_x=False, fused_budget_bytes=None,
                          tile_budget_bytes=None):
    """x_nchw: (N, C, H, W); gamma/beta: (C,). Returns (N, C, H, W)."""
    n, c, h, w = x_nchw.shape
    hw = h * w
    count = n * hw

    # NCHW read natively: (N, C, H*W) is a free contiguous reshape.
    x3d = x_nchw.reshape(n, c, hw)
    gamma2d = jnp.asarray(gamma, jnp.float32).reshape(c, 1)
    beta2d = jnp.asarray(beta, jnp.float32).reshape(c, 1)
    itemsize = x3d.dtype.itemsize

    vmem_limit, auto_tile_budget = _hw_budgets()
    tile_budget = (tile_budget_bytes if tile_budget_bytes is not None
                   else auto_tile_budget)
    fused_budget = (fused_budget_bytes if fused_budget_bytes is not None
                    else vmem_limit // 8)

    # ---- Small-tensor fast path: one fused kernel, 2 HBM passes over x ----
    if n * c * hw * itemsize <= fused_budget:
        y3d = pl.pallas_call(
            functools.partial(_fused_kernel, eps=eps,
                              negative_slope=negative_slope, count=count),
            out_shape=jax.ShapeDtypeStruct((n, c, hw), x3d.dtype),
            compiler_params=pltpu.CompilerParams(vmem_limit_bytes=vmem_limit),
        )(x3d, gamma2d, beta2d)
        return y3d.reshape(n, c, h, w)

    # ---- Two-pass path ----
    b_t, t_hw, needs_mask = _choose_tiles(n, c, hw, itemsize, tile_budget)
    n_b = n // b_t
    n_s = pl.cdiv(hw, t_hw)

    x_spec = pl.BlockSpec((b_t, c, t_hw), lambda bi, si: (bi, 0, si))
    stat_spec = pl.BlockSpec((1, c, 1), lambda bi, si: (bi, 0, 0))
    cvec_spec = pl.BlockSpec((c, 1), lambda bi, si: (0, 0))

    # Pass 1: per-batch-tile partial statistics.  Batch axis "parallel"
    # (megacore shardable on v7x), spatial axis "arbitrary" (accumulator).
    psum, psq = pl.pallas_call(
        functools.partial(_stats_kernel, hw=hw, t_hw=t_hw,
                          needs_mask=needs_mask),
        grid=(n_b, n_s),
        in_specs=[x_spec],
        out_specs=(stat_spec, stat_spec),
        out_shape=(jax.ShapeDtypeStruct((n_b, c, 1), jnp.float32),
                   jax.ShapeDtypeStruct((n_b, c, 1), jnp.float32)),
        compiler_params=pltpu.CompilerParams(
            dimension_semantics=("parallel", "arbitrary"),
            vmem_limit_bytes=vmem_limit),
    )(x3d)

    # Finalize (tiny, C elements) in plain JAX: mean/var -> fused scale/shift.
    inv_count = 1.0 / float(count)
    mean = jnp.sum(psum, axis=0) * inv_count                    # (C, 1)
    var = jnp.maximum(jnp.sum(psq, axis=0) * inv_count - mean * mean, 0.0)
    scale = gamma2d * jax.lax.rsqrt(var + eps)
    shift = beta2d - mean * scale

    # Pass 2: normalize + affine + LeakyReLU (fully parallel).
    y3d = pl.pallas_call(
        functools.partial(_normalize_kernel, negative_slope=negative_slope),
        grid=(n_b, n_s),
        in_specs=[x_spec, cvec_spec, cvec_spec],
        out_specs=x_spec,
        out_shape=jax.ShapeDtypeStruct((n, c, hw), x3d.dtype),
        input_output_aliases=({0: 0} if donate_x else {}),
        compiler_params=pltpu.CompilerParams(
            dimension_semantics=("parallel", "parallel"),
            vmem_limit_bytes=vmem_limit),
    )(x3d, scale, shift)

    return y3d.reshape(n, c, h, w)


# --------------------------------------------------------------------------
# Reference & test
# --------------------------------------------------------------------------

def _reference(x_nchw, gamma, beta, *, eps=1e-5, negative_slope=0.01):
    x = x_nchw.astype(jnp.float32)
    mean = jnp.mean(x, axis=(0, 2, 3), keepdims=True)
    var = jnp.mean((x - mean) ** 2, axis=(0, 2, 3), keepdims=True)
    y = (x - mean) * jax.lax.rsqrt(var + eps)
    y = y * gamma.reshape(1, -1, 1, 1) + beta.reshape(1, -1, 1, 1)
    return jnp.where(y >= 0.0, y, negative_slope * y)


def _check(x, gamma, beta, **kwargs):
    out = regular_batch_norm_2d(x, gamma, beta, eps=1e-5, negative_slope=0.01,
                                **kwargs)
    out = jax.block_until_ready(out)
    ref = _reference(x, gamma, beta, eps=1e-5, negative_slope=0.01)
    assert out.shape == x.shape
    err = jnp.max(jnp.abs(out.astype(jnp.float32) - ref))
    assert err < 1e-4, f"mismatch vs reference: {err}"


if __name__ == "__main__":
    key = jax.random.PRNGKey(0)
    k1, k2, k3 = jax.random.split(key, 3)

    # 1) Small shape -> fused single-kernel fast path.
    N, C, H, W = 2, 4, 16, 16
    x = jax.random.normal(k1, (N, C, H, W), dtype=jnp.float32)
    gamma = 1.0 + 0.1 * jnp.arange(C, dtype=jnp.float32)
    beta = 0.05 * jnp.arange(C, dtype=jnp.float32)
    _check(x, gamma, beta)

    # 2) Force the two-pass path with a cdiv spatial grid + masked partial
    #    tile (hw = 480 not a multiple of the 256-lane tile).
    N2, C2, H2, W2 = 2, 8, 24, 20
    x2 = jax.random.normal(k2, (N2, C2, H2, W2), dtype=jnp.float32)
    gamma2 = 1.0 + 0.1 * jnp.arange(C2, dtype=jnp.float32)
    beta2 = 0.05 * jnp.arange(C2, dtype=jnp.float32)
    _check(x2, gamma2, beta2, fused_budget_bytes=0, tile_budget_bytes=8 * 1024)

    # 3) Force the two-pass path with hw < 128 (full-extent spatial blocks +
    #    batch folding), late-CNN-stage style.
    N3, C3, H3, W3 = 4, 8, 7, 7
    x3 = jax.random.normal(k3, (N3, C3, H3, W3), dtype=jnp.float32)
    gamma3 = 1.0 + 0.1 * jnp.arange(C3, dtype=jnp.float32)
    beta3 = 0.05 * jnp.arange(C3, dtype=jnp.float32)
    _check(x3, gamma3, beta3, fused_budget_bytes=0)

    print("KERNEL_OK")
</pallas_src>

<mosaic_0001>
module attributes {stable_mosaic.version = 11 : i64} {
  func.func @_fused_kernel(%arg0: memref<2x4x256xf32, #tpu.memory_space<vmem>>, %arg1: memref<4x1xf32, #tpu.memory_space<vmem>>, %arg2: memref<4x1xf32, #tpu.memory_space<vmem>>, %arg3: memref<2x4x256xf32, #tpu.memory_space<vmem>>) attributes {dimension_semantics = [], scalar_prefetch = 0 : i64, scratch_operands = 0 : i64, tpu.core_type = #tpu.core_type<tc>} {
    %c0 = arith.constant 0 : index
    %c0_0 = arith.constant 0 : index
    %c0_1 = arith.constant 0 : index
    %0 = vector.load %arg0[%c0, %c0_0, %c0_1] : memref<2x4x256xf32, #tpu.memory_space<vmem>>, vector<2x4x256xf32>
    %cst = arith.constant dense<0.000000e+00> : vector<4xf32>
    %1 = vector.multi_reduction <add>, %0, %cst [0, 2] : vector<2x4x256xf32> to vector<4xf32>
    %2 = vector.shape_cast %1 : vector<4xf32> to vector<1x4x1xf32>
    %cst_2 = arith.constant 0.001953125 : f32
    %3 = vector.broadcast %cst_2 : f32 to vector<1x4x1xf32>
    %4 = arith.mulf %2, %3 : vector<1x4x1xf32>
    %5 = arith.mulf %0, %0 : vector<2x4x256xf32>
    %cst_3 = arith.constant dense<0.000000e+00> : vector<4xf32>
    %6 = vector.multi_reduction <add>, %5, %cst_3 [0, 2] : vector<2x4x256xf32> to vector<4xf32>
    %7 = vector.shape_cast %6 : vector<4xf32> to vector<1x4x1xf32>
    %cst_4 = arith.constant 0.001953125 : f32
    %8 = vector.broadcast %cst_4 : f32 to vector<1x4x1xf32>
    %9 = arith.mulf %7, %8 : vector<1x4x1xf32>
    %10 = arith.mulf %4, %4 : vector<1x4x1xf32>
    %11 = arith.subf %9, %10 : vector<1x4x1xf32>
    %cst_5 = arith.constant 0.000000e+00 : f32
    %12 = vector.broadcast %cst_5 : f32 to vector<1x4x1xf32>
    %13 = arith.maximumf %11, %12 : vector<1x4x1xf32>
    %c0_6 = arith.constant 0 : index
    %c0_7 = arith.constant 0 : index
    %14 = vector.load %arg1[%c0_6, %c0_7] : memref<4x1xf32, #tpu.memory_space<vmem>>, vector<4x1xf32>
    %cst_8 = arith.constant 9.99999974E-6 : f32
    %15 = vector.broadcast %cst_8 : f32 to vector<1x4x1xf32>
    %16 = arith.addf %13, %15 : vector<1x4x1xf32>
    %17 = math.rsqrt %16 : vector<1x4x1xf32>
    %18 = vector.shape_cast %14 : vector<4x1xf32> to vector<1x4x1xf32>
    %19 = arith.mulf %18, %17 : vector<1x4x1xf32>
    %c0_9 = arith.constant 0 : index
    %c0_10 = arith.constant 0 : index
    %20 = vector.load %arg2[%c0_9, %c0_10] : memref<4x1xf32, #tpu.memory_space<vmem>>, vector<4x1xf32>
    %21 = arith.mulf %4, %19 : vector<1x4x1xf32>
    %22 = vector.shape_cast %20 : vector<4x1xf32> to vector<1x4x1xf32>
    %23 = arith.subf %22, %21 : vector<1x4x1xf32>
    %24 = vector.broadcast %19 : vector<1x4x1xf32> to vector<2x4x256xf32>
    %25 = arith.mulf %0, %24 : vector<2x4x256xf32>
    %26 = vector.broadcast %23 : vector<1x4x1xf32> to vector<2x4x256xf32>
    %27 = arith.addf %25, %26 : vector<2x4x256xf32>
    %cst_11 = arith.constant 0.000000e+00 : f32
    %28 = vector.broadcast %cst_11 : f32 to vector<2x4x256xf32>
    %29 = arith.cmpf oge, %27, %28 : vector<2x4x256xf32>
    %cst_12 = arith.constant 0.00999999977 : f32
    %30 = vector.broadcast %cst_12 : f32 to vector<2x4x256xf32>
    %31 = arith.mulf %30, %27 : vector<2x4x256xf32>
    %32 = arith.select %29, %27, %31 : vector<2x4x256xi1>, vector<2x4x256xf32>
    %c0_13 = arith.constant 0 : index
    %c0_14 = arith.constant 0 : index
    %c0_15 = arith.constant 0 : index
    %33 = vector.load %arg3[%c0_13, %c0_14, %c0_15] : memref<2x4x256xf32, #tpu.memory_space<vmem>>, vector<2x4x256xf32>
    tpu.vector_store %arg3[%c0_13, %c0_14, %c0_15], %32 {strides = array<i32>} : memref<2x4x256xf32, #tpu.memory_space<vmem>>, vector<2x4x256xf32>,
    return
  }
}

</mosaic_0001>

<llo_original>
// kernel: tpu_custom_call.1
$region0: #{tpu_custom_call.1}
  #allocation0 [shape = 'u32[]', space=smem, size = 0x4, offset = 0x4, fixed_abs, tag = 'smem constant byte address 0x4 - core index']
  #allocation1 [shape = 'u32[144,128]{1,0:T(1,128)}', space=vmem, size = 0x12000, scoped, tag = 'internal scratch']
  %s0 = inlined_call_operand.hbm [shape: f32[2,4,256], index: 0, kind: input, shape index: {}]
  %s1 = inlined_call_operand.vmem [shape: f32[4,1], index: 1, kind: input, shape index: {}]
  %s2 = inlined_call_operand.vmem [shape: f32[4,1], index: 2, kind: input, shape index: {}]
  %s3 = inlined_call_operand.hbm [shape: f32[2,4,256], index: 3, kind: output, shape index: {}]
  %s4 = sld [smem:[#allocation0]]
  $region26: #{tpu_custom_call.1} parent=0
    _
  %s6 = ssub.s32 1, %s4
  %s7 = scalar_select 0, %s6, %s4
  $region1: #{tpu_custom_call.1} parent=0
    #allocation2 [shape = 'u8[8192]{0}', space=vmem, size = 0x2000, scoped, tag = 'input window, operand 0, single buffered']
    #allocation3 [shape = 's32[1]{0}', space=sflag, size = 0x4, scoped, tag = 'scoped memory for tpu_custom_call.1']
    #allocation4 [shape = 's32[1]{0}', space=sflag, size = 0x4, scoped, tag = 'scoped memory for tpu_custom_call.1']
    #allocation5 [shape = 'u8[8192]{0}', space=vmem, size = 0x2000, scoped, tag = 'output window, operand 0, single buffered']
    %8 = vsyncpa [#allocation3], 0
    %9 = vsyncpa [#allocation4], 0
    // Predicated region
    $region2: #{tpu_custom_call.1} parent=1 // pred_check
      _
    $region3: #{tpu_custom_call.1} parent=1 // pred_check_branch
      %11 = sbr.rel (0) target = $region5
    $region4: #{tpu_custom_call.1} parent=1 // pred_region
      %s13 = ssub.s32 256, 256
      %14 = vsyncadd [#allocation3], %s13
      %s15 = sshll.u32 [#allocation2], 4
      %s16 = int_to_ptr.vmem [resolvable:$true] %s15
      %21 = dma.hbm_to_vmem [thread:$0]  %s0, 256, %s16, [#allocation3], 128, 128, 8
    $region5: #{tpu_custom_call.1} parent=1 // pred_fallthru
      _
    // Predicated region
    $region6: #{tpu_custom_call.1} parent=1 // pred_check
      _
    $region7: #{tpu_custom_call.1} parent=1 // pred_check_branch
      %23 = sbr.rel (0) target = $region9
    $region8: #{tpu_custom_call.1} parent=1 // pred_region
      _
    $region9: #{tpu_custom_call.1} parent=1 // pred_fallthru
      _
    // Predicated region
    $region10: #{tpu_custom_call.1} parent=1 // pred_check
      _
    $region11: #{tpu_custom_call.1} parent=1 // pred_check_branch
      %25 = sbr.rel (0) target = $region13
    $region12: #{tpu_custom_call.1} parent=1 // pred_region
      _
    $region13: #{tpu_custom_call.1} parent=1 // pred_fallthru
      _
    // Predicated region
    $region14: #{tpu_custom_call.1} parent=1 // pred_check
      _
    $region15: #{tpu_custom_call.1} parent=1 // pred_check_branch
      %27 = sbr.rel (0) target = $region17
    $region16: #{tpu_custom_call.1} parent=1 // pred_region
      %28 = dma.done [#allocation3], 256
    $region17: #{tpu_custom_call.1} parent=1 // pred_fallthru
      _
    %v29 = vld [vmem:[#allocation2] sm:$0xff]
    %v30 = vld [vmem:[#allocation2 + $0x8] sm:$0xff]
    %v33 = vcombine.high %v29, %v29
    %v34 = vcombine.high %v30, %v30
    %vm37 = vcmask 1043456
    %v38 = vsel %vm37, %v29, 0.0
    %v39 = vsel %vm37, %v33, 0.0
    %v40 = vadd.f32 %v38, %v39
    %v41 = vsel %vm37, %v30, 0.0
    %v42 = vadd.f32 %v40, %v41
    %v43 = vsel %vm37, %v34, 0.0
    %v44 = vadd.f32 %v42, %v43
    %45 = vadd.xlane.f32.xlu0 %v44
    %v46 = vpop.xlane.xlu0 %45
    %v47 = vmul.f32 %v46, 0.001953125
    %v48 = vmul.f32 %v29, %v29
    %v49 = vmul.f32 %v30, %v30
    %v52 = vcombine.high %v48, %v48
    %v53 = vcombine.high %v49, %v49
    %v56 = vsel %vm37, %v48, 0.0
    %v57 = vsel %vm37, %v52, 0.0
    %v58 = vadd.f32 %v56, %v57
    %v59 = vsel %vm37, %v49, 0.0
    %v60 = vadd.f32 %v58, %v59
    %v61 = vsel %vm37, %v53, 0.0
    %v62 = vadd.f32 %v60, %v61
    %63 = vadd.xlane.f32.xlu0 %v62
    %v64 = vpop.xlane.xlu0 %63
    %v65 = vmul.f32 %v64, 0.001953125
    %v66 = vmul.f32 %v47, %v47
    %v67 = vsub.f32 %v65, %v66
    %v68 = vmax.f32 %v67, 0.0
    %v69 = vld [vmem:[%s1] sm:$0xf]
    %v70 = vadd.f32 %v68, 1e-05
    %v71 = vrsqrt.pop %v70
    %v72 = vmul.f32 %v69, %v71
    %v73 = vld [vmem:[%s2] sm:$0xf]
    %v74 = vmul.f32 %v47, %v72
    %v75 = vsub.f32 %v73, %v74
    %77 = vset.pattern.permute.xlu0 0
    %78 = vperm.xlu0 %77, %v72
    %v79 = vpop.permute.xlu0 %78
    %v81 = vunpack.c.l.s4 839922192
    %v82 = vunpack.c.0.s8 %v81
    %v83 = vlaneseq
    %v84 = vshrl.u32 %v83, 7
    %v85 = vsub.s32 %v82, %v84
    %v86 = vrot.slane %v79, %v85
    %v88 = vmul.f32 %v29, %v86
    %v89 = vmul.f32 %v30, %v86
    %91 = vset.pattern.permute.xlu0 0
    %92 = vperm.xlu0 %91, %v75
    %v93 = vpop.permute.xlu0 %92
    %v95 = vunpack.c.l.s4 839922192
    %v96 = vunpack.c.0.s8 %v95
    %v97 = vlaneseq
    %v98 = vshrl.u32 %v97, 7
    %v99 = vsub.s32 %v96, %v98
    %v100 = vrot.slane %v93, %v99
    %v102 = vadd.f32 %v88, %v100
    %v103 = vadd.f32 %v89, %v100
    %vm104 = vcmp.ge.f32.partialorder %v102, 0.0
    %vm105 = vcmp.ge.f32.partialorder %v103, 0.0
    %v106 = vmul.f32 %v102, 0.01
    %v107 = vmul.f32 %v103, 0.01
    %v108 = vsel %vm104, %v102, %v106
    %v109 = vsel %vm105, %v103, %v107
    %110 = vst [vmem:[#allocation5] sm:$0xff] %v108
    %111 = vst [vmem:[#allocation5 + $0x8] sm:$0xff] %v109
    // Predicated region
    $region18: #{tpu_custom_call.1} parent=1 // pred_check
      _
    $region19: #{tpu_custom_call.1} parent=1 // pred_check_branch
      %113 = sbr.rel (0) target = $region21
    $region20: #{tpu_custom_call.1} parent=1 // pred_region
      %s115 = ssub.s32 256, 256
      %116 = vsyncadd [#allocation4], %s115
      %s117 = sshll.u32 [#allocation5], 4
      %s118 = int_to_ptr.vmem [resolvable:$true] %s117
      %123 = dma.vmem_to_hbm [thread:$0]  %s118, 256, %s3, [#allocation4], 128, 128, 8
    $region21: #{tpu_custom_call.1} parent=1 // pred_fallthru
      _
    // Predicated region
    $region22: #{tpu_custom_call.1} parent=1 // pred_check
      _
    $region23: #{tpu_custom_call.1} parent=1 // pred_check_branch
      %125 = sbr.rel (0) target = $region25
    $region24: #{tpu_custom_call.1} parent=1 // pred_region
      %126 = dma.done [#allocation4], 256
    $region25: #{tpu_custom_call.1} parent=1 // pred_fallthru
      _
    %127 = vsyncpa [#allocation3], 1
    %128 = vsyncpa [#allocation4], 1

</llo_original>
